<compile_context>
chip_gen: v7x
topology: tpu7x:2x2x1
jax: 0.10.0
libtpu: 0.0.40
codegen_flags: <defaults>
</compile_context>

<pallas_src>
import math
import functools

import jax
import jax.numpy as jnp
from jax import lax
from jax.experimental import pallas as pl
from jax.experimental.pallas import tpu as pltpu


# ----------------------------------------------------------------------------
# Tiled linear kernel:  y = x @ w + b   (f32 accumulation over K grid axis)
# ----------------------------------------------------------------------------
def _linear_kernel(x_ref, w_ref, b_ref, o_ref, acc_ref):
    @pl.when(pl.program_id(2) == 0)
    def _():
        acc_ref[...] = jnp.zeros_like(acc_ref)

    acc_ref[...] += jnp.dot(
        x_ref[...], w_ref[...], preferred_element_type=jnp.float32
    )

    @pl.when(pl.program_id(2) == pl.num_programs(2) - 1)
    def _():
        o_ref[...] = acc_ref[...] + b_ref[...]


def _pick_tile(dim, target):
    """Largest tile <= target that divides dim (falls back to a smaller divisor)."""
    if dim <= target:
        return dim
    t = target
    while dim % t != 0:
        t //= 2
    return t


def linear_pallas(x2d, w, b, *, tm=256, tn=256, tk=512):
    """y = x2d @ w + b, tiled over (M, N, K) with a VMEM f32 accumulator."""
    M, K = x2d.shape
    K2, N = w.shape
    assert K == K2
    tm = _pick_tile(M, tm)
    tn = _pick_tile(N, tn)
    tk = _pick_tile(K, tk)
    b2d = b.reshape(1, N)
    grid = (M // tm, N // tn, K // tk)
    return pl.pallas_call(
        _linear_kernel,
        out_shape=jax.ShapeDtypeStruct((M, N), jnp.float32),
        grid_spec=pltpu.PrefetchScalarGridSpec(
            num_scalar_prefetch=0,
            grid=grid,
            in_specs=[
                pl.BlockSpec((tm, tk), lambda i, j, k: (i, k)),
                pl.BlockSpec((tk, tn), lambda i, j, k: (k, j)),
                pl.BlockSpec((1, tn), lambda i, j, k: (0, j)),
            ],
            out_specs=pl.BlockSpec((tm, tn), lambda i, j, k: (i, j)),
            scratch_shapes=[pltpu.VMEM((tm, tn), jnp.float32)],
        ),
        compiler_params=pltpu.CompilerParams(
            dimension_semantics=("parallel", "parallel", "arbitrary")
        ),
    )(x2d, w, b2d)


# ----------------------------------------------------------------------------
# Attention kernel: one grid step per batch element, all heads batched.
# ----------------------------------------------------------------------------
def _attention_kernel(q_ref, k_ref, v_ref, mask_ref, out_ref, attn_ref, *, scale):
    # Per-batch tile: q,k,v are (H, S, D); mask is (S, S) with 1.0 = blocked.
    # Fold 1/sqrt(D) into q (O(H*S*D) VPU instead of O(H*S*S)), then feed the
    # MXU bf16 with f32 accumulation.
    q = (q_ref[...] * scale).astype(jnp.bfloat16)
    k = k_ref[...].astype(jnp.bfloat16)
    v = v_ref[...].astype(jnp.bfloat16)

    # Batched QK^T without an explicit transpose: contract D on both operands,
    # batch over heads.
    scores = lax.dot_general(
        q, k,
        dimension_numbers=(((2,), (2,)), ((0,), (0,))),
        preferred_element_type=jnp.float32,
    )  # (H, S, S)
    # Mask scaled in-kernel (VPU slot under MXU; avoids a wrapper HBM pass).
    scores = scores + mask_ref[...][None, :, :] * (-1000000000.0)

    # Numerically-stable softmax along the last axis, kept in f32.
    scores = scores - jnp.max(scores, axis=-1, keepdims=True)
    e = jnp.exp(scores)
    denom = jnp.sum(e, axis=-1, keepdims=True)
    p = e * pl.reciprocal(denom, approx=True)   # EUP slot, frees VALU

    attn_ref[...] = p
    out_ref[...] = lax.dot_general(
        p.astype(jnp.bfloat16), v,
        dimension_numbers=(((2,), (1,)), ((0,), (0,))),
        preferred_element_type=jnp.float32,
    )  # (H, S, D)


def attention_pallas(q, k, v, mask):
    """q,k,v: (B, H, S, D); mask: (B, 1, S, S) with 1.0 where blocked.

    Returns (context (B,H,S,D), weights (B,H,S,S))."""
    B, H, S, D = q.shape
    kernel = functools.partial(_attention_kernel, scale=1.0 / math.sqrt(D))

    qkv_spec = pl.BlockSpec((None, H, S, D), lambda b: (b, 0, 0, 0))
    mask_spec = pl.BlockSpec((None, None, S, S), lambda b: (b, 0, 0, 0))
    out_spec = pl.BlockSpec((None, H, S, D), lambda b: (b, 0, 0, 0))
    attn_spec = pl.BlockSpec((None, H, S, S), lambda b: (b, 0, 0, 0))

    return pl.pallas_call(
        kernel,
        grid=(B,),
        in_specs=[qkv_spec, qkv_spec, qkv_spec, mask_spec],
        out_specs=(out_spec, attn_spec),
        out_shape=(
            jax.ShapeDtypeStruct((B, H, S, D), jnp.float32),
            jax.ShapeDtypeStruct((B, H, S, S), jnp.float32),
        ),
        compiler_params=pltpu.CompilerParams(
            dimension_semantics=("parallel",)
        ),
    )(q, k, v, mask)


# ----------------------------------------------------------------------------
# Module: parameter init + forward
# ----------------------------------------------------------------------------
def xavier_normal(key, shape):
    # shape = (fan_out, fan_in) as in torch Linear weights
    fan_out, fan_in = shape
    std = math.sqrt(2.0 / (fan_in + fan_out))
    return std * jax.random.normal(key, shape, dtype=jnp.float32)


def init_mha_params(key, D, H):
    ks = jax.random.split(key, 8)
    DH = D * H

    def linear_bias(k, fan_in, fan_out):
        bound = 1.0 / math.sqrt(fan_in)
        return jax.random.uniform(
            k, (fan_out,), minval=-bound, maxval=bound, dtype=jnp.float32
        )

    params = {
        "wq_w": xavier_normal(ks[0], (DH, D)),
        "wq_b": linear_bias(ks[1], D, DH),
        "wk_w": xavier_normal(ks[2], (DH, D)),
        "wk_b": linear_bias(ks[3], D, DH),
        "wv_w": xavier_normal(ks[4], (DH, D)),
        "wv_b": linear_bias(ks[5], D, DH),
        "dense_w": xavier_normal(ks[6], (D, DH)),
        "dense_b": linear_bias(ks[7], DH, D),
    }
    return params


def split_heads(x, H, D):
    # (B, S, D*H) -> (B, H, S, D)
    B, S, _ = x.shape
    return x.reshape(B, S, H, D).transpose(0, 2, 1, 3)


def concat_heads(x):
    # (B, H, S, D) -> (B, S, H*D)
    B, H, S, D = x.shape
    return x.transpose(0, 2, 1, 3).reshape(B, S, H * D)


def mha_forward(params, x, mask, H, D):
    """x: (B, S, D), mask: (B, 1, S, S). Returns (output (B,S,D), attn (B,H,S,S))."""
    B, S, _ = x.shape
    DH = D * H
    x2d = x.reshape(B * S, D)

    # Fused Q/K/V projection: one (B*S, D) @ (D, 3*DH) matmul instead of three.
    # (torch Linear: y = x @ W^T + b)
    w_qkv = jnp.concatenate(
        [params["wq_w"].T, params["wk_w"].T, params["wv_w"].T], axis=1
    )
    b_qkv = jnp.concatenate([params["wq_b"], params["wk_b"], params["wv_b"]])
    qkv = linear_pallas(x2d, w_qkv, b_qkv).reshape(B, S, 3 * DH)

    q = qkv[..., 0 * DH:1 * DH]
    k = qkv[..., 1 * DH:2 * DH]
    v = qkv[..., 2 * DH:3 * DH]

    qh = split_heads(q, H, D)
    kh = split_heads(k, H, D)
    vh = split_heads(v, H, D)

    context, attn_weights = attention_pallas(qh, kh, vh, mask)

    concat = concat_heads(context)  # (B, S, D*H)
    out2d = linear_pallas(
        concat.reshape(B * S, DH), params["dense_w"].T, params["dense_b"]
    )
    output = out2d.reshape(B, S, D)
    return output, attn_weights


# ----------------------------------------------------------------------------
# Pure-JAX f32 reference for verification
# ----------------------------------------------------------------------------
def mha_reference(params, x, mask, H, D):
    q = x @ params["wq_w"].T + params["wq_b"]
    k = x @ params["wk_w"].T + params["wk_b"]
    v = x @ params["wv_w"].T + params["wv_b"]
    qh, kh, vh = (split_heads(t, H, D) for t in (q, k, v))
    scores = jnp.einsum("bhsd,bhtd->bhst", qh, kh) / math.sqrt(D)
    scores = scores + mask * (-1000000000.0)
    p = jax.nn.softmax(scores, axis=-1)
    ctx = jnp.einsum("bhst,bhtd->bhsd", p, vh)
    out = concat_heads(ctx) @ params["dense_w"].T + params["dense_b"]
    return out, p


# ----------------------------------------------------------------------------
# Main
# ----------------------------------------------------------------------------
if __name__ == "__main__":
    B, S, D, H = 2, 8, 32, 4

    key = jax.random.PRNGKey(0)
    k_param, k_x = jax.random.split(key)

    params = init_mha_params(k_param, D, H)
    x = jax.random.normal(k_x, (B, S, D), dtype=jnp.float32)

    # causal mask: 1.0 where attention is blocked (upper triangle), 0.0 elsewhere
    causal = jnp.triu(jnp.ones((S, S), dtype=jnp.float32), k=1)
    mask = jnp.broadcast_to(causal, (B, 1, S, S))

    out, attn = mha_forward(params, x, mask, H, D)
    out = jax.block_until_ready(out)
    attn = jax.block_until_ready(attn)

    ref_out, ref_attn = mha_reference(params, x, mask, H, D)

    assert out.shape == (B, S, D)
    assert attn.shape == (B, H, S, S)
    # Tolerances account for bf16 MXU inputs + approximate EUP reciprocal.
    assert jnp.allclose(out, ref_out, atol=5e-2, rtol=5e-2)
    assert jnp.allclose(attn, ref_attn, atol=2e-2, rtol=2e-2)

    print("KERNEL_OK")
</pallas_src>

<mosaic_0001>
module attributes {stable_mosaic.version = 11 : i64} {
  func.func @_linear_kernel(%arg0: i32, %arg1: i32, %arg2: i32, %arg3: memref<16x32xf32, #tpu.memory_space<vmem>>, %arg4: memref<32x128xf32, #tpu.memory_space<vmem>>, %arg5: memref<1x128xf32, #tpu.memory_space<vmem>>, %arg6: memref<16x128xf32, #tpu.memory_space<vmem>>, %arg7: memref<16x128xf32, #tpu.memory_space<vmem>>) attributes {dimension_semantics = [#tpu.dimension_semantics<parallel>, #tpu.dimension_semantics<parallel>, #tpu.dimension_semantics<arbitrary>], iteration_bounds = array<i64: 1, 3, 1>, scalar_prefetch = 0 : i64, scratch_operands = 1 : i64, tpu.core_type = #tpu.core_type<tc>, window_params = [{transform_indices = @transform_0, window_bounds = array<i64: 16, 32>}, {transform_indices = @transform_1, window_bounds = array<i64: 32, 128>}, {transform_indices = @transform_2, window_bounds = array<i64: 1, 128>}, {transform_indices = @transform_3, window_bounds = array<i64: 16, 128>}]} {
    %c0_i32 = arith.constant 0 : i32
    %0 = arith.cmpi eq, %arg2, %c0_i32 : i32
    %1 = arith.extui %0 : i1 to i32
    %c0_i32_0 = arith.constant 0 : i32
    %2 = arith.cmpi ne, %1, %c0_i32_0 : i32
    scf.if %2 {
      %cst_10 = arith.constant 0.000000e+00 : f32
      %12 = vector.broadcast %cst_10 : f32 to vector<16x128xf32>
      %c0_11 = arith.constant 0 : index
      %c0_12 = arith.constant 0 : index
      %13 = vector.load %arg7[%c0_11, %c0_12] : memref<16x128xf32, #tpu.memory_space<vmem>>, vector<16x128xf32>
      tpu.vector_store %arg7[%c0_11, %c0_12], %12 {strides = array<i32>} : memref<16x128xf32, #tpu.memory_space<vmem>>, vector<16x128xf32>,
    } else {
    }
    %c0 = arith.constant 0 : index
    %c0_1 = arith.constant 0 : index
    %3 = vector.load %arg7[%c0, %c0_1] : memref<16x128xf32, #tpu.memory_space<vmem>>, vector<16x128xf32>
    %c0_2 = arith.constant 0 : index
    %c0_3 = arith.constant 0 : index
    %4 = vector.load %arg3[%c0_2, %c0_3] : memref<16x32xf32, #tpu.memory_space<vmem>>, vector<16x32xf32>
    %c0_4 = arith.constant 0 : index
    %c0_5 = arith.constant 0 : index
    %5 = vector.load %arg4[%c0_4, %c0_5] : memref<32x128xf32, #tpu.memory_space<vmem>>, vector<32x128xf32>
    %cst = arith.constant dense<0.000000e+00> : vector<16x128xf32>
    %6 = tpu.matmul %4, %5, %cst {dimension_numbers = #tpu.dot_dimension_numbers<[1], [0], [0], [1], [0, 0, 1, 1], [], []>} : vector<16x32xf32>, vector<32x128xf32>, vector<16x128xf32> -> vector<16x128xf32>
    %7 = arith.addf %3, %6 : vector<16x128xf32>
    %c0_6 = arith.constant 0 : index
    %c0_7 = arith.constant 0 : index
    %8 = vector.load %arg7[%c0_6, %c0_7] : memref<16x128xf32, #tpu.memory_space<vmem>>, vector<16x128xf32>
    tpu.vector_store %arg7[%c0_6, %c0_7], %7 {strides = array<i32>} : memref<16x128xf32, #tpu.memory_space<vmem>>, vector<16x128xf32>,
    %c0_i32_8 = arith.constant 0 : i32
    %9 = arith.cmpi eq, %arg2, %c0_i32_8 : i32
    %10 = arith.extui %9 : i1 to i32
    %c0_i32_9 = arith.constant 0 : i32
    %11 = arith.cmpi ne, %10, %c0_i32_9 : i32
    scf.if %11 {
      %c0_10 = arith.constant 0 : index
      %c0_11 = arith.constant 0 : index
      %12 = vector.load %arg7[%c0_10, %c0_11] : memref<16x128xf32, #tpu.memory_space<vmem>>, vector<16x128xf32>
      %c0_12 = arith.constant 0 : index
      %c0_13 = arith.constant 0 : index
      %13 = vector.load %arg5[%c0_12, %c0_13] : memref<1x128xf32, #tpu.memory_space<vmem>>, vector<1x128xf32>
      %14 = vector.broadcast %13 : vector<1x128xf32> to vector<16x128xf32>
      %15 = arith.addf %12, %14 : vector<16x128xf32>
      %c0_14 = arith.constant 0 : index
      %c0_15 = arith.constant 0 : index
      %16 = vector.load %arg6[%c0_14, %c0_15] : memref<16x128xf32, #tpu.memory_space<vmem>>, vector<16x128xf32>
      tpu.vector_store %arg6[%c0_14, %c0_15], %15 {strides = array<i32>} : memref<16x128xf32, #tpu.memory_space<vmem>>, vector<16x128xf32>,
    } else {
    }
    return
  }
  func.func @transform_0(%arg0: i32, %arg1: i32, %arg2: i32) -> (i32, i32) {
    %c0_i32 = arith.constant 0 : i32
    return %arg0, %arg2 : i32, i32
  }
  func.func @transform_1(%arg0: i32, %arg1: i32, %arg2: i32) -> (i32, i32) {
    %c0_i32 = arith.constant 0 : i32
    return %arg2, %arg1 : i32, i32
  }
  func.func @transform_2(%arg0: i32, %arg1: i32, %arg2: i32) -> (i32, i32) {
    %c0_i32 = arith.constant 0 : i32
    %c0_i32_0 = arith.constant 0 : i32
    return %c0_i32, %arg1 : i32, i32
  }
  func.func @transform_3(%arg0: i32, %arg1: i32, %arg2: i32) -> (i32, i32) {
    %c0_i32 = arith.constant 0 : i32
    return %arg0, %arg1 : i32, i32
  }
}

</mosaic_0001>

<llo_original>
// kernel: tpu_custom_call.1
$region0: #{tpu_custom_call.1}
  #allocation0 [shape = 'u32[]', space=smem, size = 0x4, offset = 0x4, fixed_abs, tag = 'smem constant byte address 0x4 - core index']
  #allocation1 [shape = 'u32[144,128]{1,0:T(1,128)}', space=vmem, size = 0x12000, scoped, tag = 'internal scratch']
  #allocation2 [shape = 'f32[16,128]{1,0:T(8,128)}', space=vmem, size = 0x2000, scoped, tag = 'scratch operand']
  %s0 = inlined_call_operand.hbm [shape: f32[16,32], index: 0, kind: input, shape index: {}]
  %s1 = inlined_call_operand.hbm [shape: f32[32,384], index: 1, kind: input, shape index: {}]
  %s2 = inlined_call_operand.vmem [shape: f32[1,384], index: 2, kind: input, shape index: {}]
  %s3 = inlined_call_operand.hbm [shape: f32[16,384], index: 3, kind: output, shape index: {}]
  %s4 = sld [smem:[#allocation0]]
  $region61: #{tpu_custom_call.1} parent=0
    _
  %s6 = ssub.s32 1, %s4
  %s7 = scalar_select 0, %s6, %s4
  $region1: #{tpu_custom_call.1} parent=0
    #allocation3 [shape = 'u8[8192]{0}', space=vmem, size = 0x2000, scoped, tag = 'input window, operand 0, single buffered']
    #allocation4 [shape = 's32[2]{0}', space=sflag, size = 0x8, scoped, tag = 'scoped memory for tpu_custom_call.1']
    #allocation5 [shape = 's32[2]{0}', space=sflag, size = 0x8, scoped, tag = 'scoped memory for tpu_custom_call.1']
    #allocation6 [shape = 'u8[32768]{0}', space=vmem, size = 0x8000, scoped, tag = 'input window, operand 1']
    #allocation7 [shape = 's32[2]{0}', space=sflag, size = 0x8, scoped, tag = 'scoped memory for tpu_custom_call.1']
    #allocation8 [shape = 'u8[16384]{0}', space=vmem, size = 0x4000, scoped, tag = 'output window, operand 0']
    %8 = vsyncpa [#allocation4], 0
    %9 = vsyncpa [#allocation7], 0
    %s10 = scalar_lea.sflag [#allocation7], 1
    %11 = vsyncpa %s10, 0
    %12 = vsyncpa [#allocation5], 0
    %s13 = scalar_lea.sflag [#allocation5], 1
    %14 = vsyncpa %s13, 0
    loop: start=0, step=1, limit=5
    $region2: #{tpu_custom_call.1} parent=1 // loop_pre_header
      _
    $region3: #{tpu_custom_call.1} parent=1 // loop_header
      %s16 = sphi 0, %s20
      %p17 = scmp.ge.s32.totalorder %s16, 5
      %s23 = sphi 0, %s42
      %s24 = sphi 0, %s38
      %s25 = sphi 0, %s34
      %s26 = sphi 0, %s23
      %s27 = sphi 0, %s24
      %s28 = sphi 0, %s25
      %s29 = sphi 0, %s26
      %s30 = sphi 0, %s27
      %s31 = sphi 0, %s28
      %s47 = sphi 0, %s49
      %s50 = sphi 0, %s47
      %s51 = sphi 0, %s50
      %s67 = sphi 0, %s51
      %s75 = sphi 0, %s77
      %s78 = sphi 0, %s75
      %s79 = sphi 0, %s78
      %s95 = sphi 0, %s79
      %s101 = sphi 0, %s103
      %s104 = sphi 0, %s101
      %s105 = sphi 0, %s104
      %s121 = sphi 0, %s105
      %s129 = sphi 0, %s131
      %s132 = sphi 0, %s129
      %s133 = sphi 0, %s132
      %s149 = sphi 0, %s133
    $region4: #{tpu_custom_call.1} parent=1 // loop_header_branch
      %19 = sbr.rel (%p17) target = $region8
    $region5: #{tpu_custom_call.1} parent=1 // loop_body
      %s21 = ssub.s32 %s16, 1
      %s22 = ssub.s32 %s16, 2
      %s32 = sadd.s32 1, %s25
      %p33 = scmp.ge.s32.totalorder %s32, 1
      %s34 = scalar_select %p33, 0, %s32
      %s35 = sadd.s32 1, %s24
      %s36 = scalar_select %p33, %s35, %s24
      %p37 = scmp.ge.s32.totalorder %s36, 3
      %s38 = scalar_select %p37, 0, %s36
      %s39 = sadd.s32 1, %s23
      %s40 = scalar_select %p37, %s39, %s23
      %p41 = scmp.ge.s32.totalorder %s40, 1
      %s42 = scalar_select %p41, 0, %s40
      %s43 = ssub.s32 %s23, %s42
      %s44 = ssub.s32 %s25, %s34
      %s45 = sor.u32 %s43, %s44
      %p46 = scmp.eq.s32.totalorder %s45, 0
      %s48 = sadd.s32 %s47, 1
      %s49 = scalar_select %p46, %s47, %s48
      %p52 = pneg %p46
      %p53 = scmp.eq.s32.totalorder %s16, 2
      %p54 = por %p52, %p53
      %p55 = scmp.ne.s32.totalorder %s47, %s50
      %p56 = scmp.eq.s32.totalorder %s16, 0
      %p57 = por %p55, %p56
      %p58 = scmp.ne.s32.totalorder %s47, %s50
      %p59 = scmp.eq.s32.totalorder %s21, 2
      %p60 = por %p58, %p59
      %p61 = scmp.ne.s32.totalorder %s50, %s51
      %p62 = scmp.eq.s32.totalorder %s21, 0
      %p63 = por %p61, %p62
      %p64 = scmp.ne.s32.totalorder %s50, %s51
      %p65 = scmp.eq.s32.totalorder %s22, 2
      %p66 = por %p64, %p65
      %p68 = scmp.ne.s32.totalorder %s51, %s67
      %p69 = scmp.eq.s32.totalorder %s22, 0
      %p70 = por %p68, %p69
      %s71 = ssub.s32 %s25, %s34
      %s72 = ssub.s32 %s24, %s38
      %s73 = sor.u32 %s71, %s72
      %p74 = scmp.eq.s32.totalorder %s73, 0
      %s76 = sadd.s32 %s75, 1
      %s77 = scalar_select %p74, %s75, %s76
      %p80 = pneg %p74
      %p81 = scmp.eq.s32.totalorder %s16, 2
      %p82 = por %p80, %p81
      %p83 = scmp.ne.s32.totalorder %s75, %s78
      %p84 = scmp.eq.s32.totalorder %s16, 0
      %p85 = por %p83, %p84
      %p86 = scmp.ne.s32.totalorder %s75, %s78
      %p87 = scmp.eq.s32.totalorder %s21, 2
      %p88 = por %p86, %p87
      %p89 = scmp.ne.s32.totalorder %s78, %s79
      %p90 = scmp.eq.s32.totalorder %s21, 0
      %p91 = por %p89, %p90
      %p92 = scmp.ne.s32.totalorder %s78, %s79
      %p93 = scmp.eq.s32.totalorder %s22, 2
      %p94 = por %p92, %p93
      %p96 = scmp.ne.s32.totalorder %s79, %s95
      %p97 = scmp.eq.s32.totalorder %s22, 0
      %p98 = por %p96, %p97
      %s99 = ssub.s32 %s24, %s38
      %p100 = scmp.eq.s32.totalorder %s99, 0
      %s102 = sadd.s32 %s101, 1
      %s103 = scalar_select %p100, %s101, %s102
      %p106 = pneg %p100
      %p107 = scmp.eq.s32.totalorder %s16, 2
      %p108 = por %p106, %p107
      %p109 = scmp.ne.s32.totalorder %s101, %s104
      %p110 = scmp.eq.s32.totalorder %s16, 0
      %p111 = por %p109, %p110
      %p112 = scmp.ne.s32.totalorder %s101, %s104
      %p113 = scmp.eq.s32.totalorder %s21, 2
      %p114 = por %p112, %p113
      %p115 = scmp.ne.s32.totalorder %s104, %s105
      %p116 = scmp.eq.s32.totalorder %s21, 0
      %p117 = por %p115, %p116
      %p118 = scmp.ne.s32.totalorder %s104, %s105
      %p119 = scmp.eq.s32.totalorder %s22, 2
      %p120 = por %p118, %p119
      %p122 = scmp.ne.s32.totalorder %s105, %s121
      %p123 = scmp.eq.s32.totalorder %s22, 0
      %p124 = por %p122, %p123
      %s125 = ssub.s32 %s23, %s42
      %s126 = ssub.s32 %s24, %s38
      %s127 = sor.u32 %s125, %s126
      %p128 = scmp.eq.s32.totalorder %s127, 0
      %s130 = sadd.s32 %s129, 1
      %s131 = scalar_select %p128, %s129, %s130
      %p134 = pneg %p128
      %p135 = scmp.eq.s32.totalorder %s16, 2
      %p136 = por %p134, %p135
      %p137 = scmp.ne.s32.totalorder %s129, %s132
      %p138 = scmp.eq.s32.totalorder %s16, 0
      %p139 = por %p137, %p138
      %p140 = scmp.ne.s32.totalorder %s129, %s132
      %p141 = scmp.eq.s32.totalorder %s21, 2
      %p142 = por %p140, %p141
      %p143 = scmp.ne.s32.totalorder %s132, %s133
      %p144 = scmp.eq.s32.totalorder %s21, 0
      %p145 = por %p143, %p144
      %p146 = scmp.ne.s32.totalorder %s132, %s133
      %p147 = scmp.eq.s32.totalorder %s22, 2
      %p148 = por %p146, %p147
      %p150 = scmp.ne.s32.totalorder %s133, %s149
      %p151 = scmp.eq.s32.totalorder %s22, 0
      %p152 = por %p150, %p151
      %p153 = scmp.le.s32.totalorder 1, %s16
      %p154 = scmp.lt.s32.totalorder %s16, 4
      %p155 = pnand %p153, %p154
      %p156 = pneg %p155
      // Predicated region
      $region9: #{tpu_custom_call.1} parent=5 // pred_check
        _
      $region10: #{tpu_custom_call.1} parent=5 // pred_check_branch
        %158 = sbr.rel (%p155) target = $region12
      $region11: #{tpu_custom_call.1} parent=5 // pred_region
        %s159 = ssub.s32 %s16, 1
        // Predicated region
        $region13: #{tpu_custom_call.1} parent=11 // pred_check
          %p160 = pneg %p63
        $region14: #{tpu_custom_call.1} parent=11 // pred_check_branch
          %162 = sbr.rel (%p160) target = $region16
        $region15: #{tpu_custom_call.1} parent=11 // pred_region
          %s163 = smul.u32 2, %s26
          %s165 = ssub.s32 256, 256
          %166 = vsyncadd [#allocation4], %s165
          %s167 = sadd.s32 %s28, %s163
          %s168 = smul.addr %s167, 128
          %s169 = scalar_lea.hbm %s0, %s168
          %s170 = sshll.u32 [#allocation3], 4
          %s171 = int_to_ptr.vmem [resolvable:$true] %s170
          %176 = dma.hbm_to_vmem [thread:$0]  %s169, 256, %s171, [#allocation4], 128, 128, 8
        $region16: #{tpu_custom_call.1} parent=11 // pred_fallthru
          _
      $region12: #{tpu_custom_call.1} parent=5 // pred_fallthru
        _
      %p177 = scmp.lt.s32.totalorder %s16, 3
      // Predicated region
      $region17: #{tpu_custom_call.1} parent=5 // pred_check
        %p178 = pneg %p177
      $region18: #{tpu_custom_call.1} parent=5 // pred_check_branch
        %180 = sbr.rel (%p178) target = $region20
      $region19: #{tpu_custom_call.1} parent=5 // pred_region
        // Predicated region
        $region21: #{tpu_custom_call.1} parent=19 // pred_check
          %p181 = pneg %p85
        $region22: #{tpu_custom_call.1} parent=19 // pred_check_branch
          %183 = sbr.rel (%p181) target = $region24
        $region23: #{tpu_custom_call.1} parent=19 // pred_region
          %s184 = sand.u32 %s75, 1
          %s185 = scalar_lea.sflag [#allocation7], %s184
          %s186 = sand.u32 %s75, 1
          %s187 = smul.addr %s186, 32
          %s188 = scalar_lea.vmem [#allocation6], %s187
          %s189 = smul.u32 4, %s25
          %s191 = ssub.s32 512, 512
          %192 = vsyncadd %s185, %s191
          %s193 = smul.addr %s189, 3
          %s194 = sadd.s32 %s24, %s193
          %s195 = smul.addr %s194, 128
          %s196 = scalar_lea.hbm %s1, %s195
          %s197 = sshll.u32 %s188, 4
          %s198 = int_to_ptr.vmem [resolvable:$true] %s197
          %203 = dma.hbm_to_vmem [thread:$0]  %s196, 512, %s198, %s185, 384, 128, 8
        $region24: #{tpu_custom_call.1} parent=19 // pred_fallthru
          _
        // Predicated region
        $region25: #{tpu_custom_call.1} parent=19 // pred_check
          %p204 = pneg %p111
        $region26: #{tpu_custom_call.1} parent=19 // pred_check_branch
          %206 = sbr.rel (%p204) target = $region28
        $region27: #{tpu_custom_call.1} parent=19 // pred_region
          %p207 = scmp.lt.s32.totalorder %s24, 2
          %s208 = scalar_select %p207, %s24, 2
          %s209 = scalar_lea.vmem %s2, %s208
        $region28: #{tpu_custom_call.1} parent=19 // pred_fallthru
          _
      $region20: #{tpu_custom_call.1} parent=5 // pred_fallthru
        _
      %p210 = scmp.le.s32.totalorder 1, %s16
      %p211 = scmp.lt.s32.totalorder %s16, 4
      %p212 = pnand %p210, %p211
      %p213 = pneg %p212
      // Predicated region
      $region29: #{tpu_custom_call.1} parent=5 // pred_check
        _
      $region30: #{tpu_custom_call.1} parent=5 // pred_check_branch
        %215 = sbr.rel (%p212) target = $region32
      $region31: #{tpu_custom_call.1} parent=5 // pred_region
        %s216 = ssub.s32 %s16, 1
        // Predicated region
        $region33: #{tpu_custom_call.1} parent=31 // pred_check
          %p217 = pneg %p63
        $region34: #{tpu_custom_call.1} parent=31 // pred_check_branch
          %219 = sbr.rel (%p217) target = $region36
        $region35: #{tpu_custom_call.1} parent=31 // pred_region
          %220 = dma.done [#allocation4], 256
        $region36: #{tpu_custom_call.1} parent=31 // pred_fallthru
          _
        %s221 = sand.u32 %s78, 1
        %s222 = scalar_lea.sflag [#allocation7], %s221
        %s223 = sand.u32 %s78, 1
        %s224 = smul.addr %s223, 32
        %s225 = scalar_lea.vmem [#allocation6], %s224
        // Predicated region
        $region37: #{tpu_custom_call.1} parent=31 // pred_check
          %p226 = pneg %p91
        $region38: #{tpu_custom_call.1} parent=31 // pred_check_branch
          %228 = sbr.rel (%p226) target = $region40
        $region39: #{tpu_custom_call.1} parent=31 // pred_region
          %229 = dma.done %s222, 512
        $region40: #{tpu_custom_call.1} parent=31 // pred_fallthru
          _
        %p230 = pneg %p63
        %p231 = pneg %p60
        %s232 = sand.u32 %s78, 1
        %s233 = scalar_lea.sflag [#allocation7], %s232
        %s234 = sand.u32 %s78, 1
        %s235 = smul.addr %s234, 32
        %s236 = scalar_lea.vmem [#allocation6], %s235
        %p237 = pneg %p91
        %p238 = pneg %p88
        %p239 = scmp.lt.s32.totalorder %s27, 2
        %s240 = scalar_select %p239, %s27, 2
        %s241 = scalar_lea.vmem %s2, %s240
        %p242 = pneg %p117
        %p243 = pneg %p114
        %p244 = pneg %p145
        %p245 = pneg %p142
        %s246 = sand.u32 %s132, 1
        %s247 = scalar_lea.sflag [#allocation5], %s246
        %s248 = sand.u32 %s132, 1
        %s249 = smul.addr %s248, 16
        %s250 = scalar_lea.vmem [#allocation8], %s249
        %s251 = smul.u32 2, %s26
        %s252 = smul.u32 4, %s28
        %p253 = scmp.lt.s32.totalorder %s27, 2
        %s254 = scalar_select %p253, %s27, 2
        %s255 = scalar_lea.vmem %s2, %s254
        %s256 = smul.u32 2, %s26
        %p257 = scmp.eq.s32.totalorder %s28, 0
        // Predicated region
        $region41: #{tpu_custom_call.1} parent=31 // pred_check
          %p258 = pneg %p257
        $region42: #{tpu_custom_call.1} parent=31 // pred_check_branch
          %260 = sbr.rel (%p258) target = $region44
        $region43: #{tpu_custom_call.1} parent=31 // pred_region
          %261 = vst [vmem:[#allocation2] sm:$0xff] 0.0
          %262 = vst [vmem:[#allocation2 + $0x8] sm:$0xff] 0.0
        $region44: #{tpu_custom_call.1} parent=31 // pred_fallthru
          _
        %v263 = vld [vmem:[#allocation2] sm:$0xff]
        %v264 = vld [vmem:[#allocation2 + $0x8] sm:$0xff]
        %v265 = vld [vmem:[#allocation3] sm:$0xff]
        %v266 = vld [vmem:[#allocation3 + $0x8] sm:$0xff]
        %v267 = vld [vmem:[%s225] sm:$0xff]
        %v268 = vld [vmem:[%s225 + $0x8] sm:$0xff]
        %v269 = vld [vmem:[%s225 + $0x10] sm:$0xff]
        %v270 = vld [vmem:[%s225 + $0x18] sm:$0xff]
        %vm271 = vcmask 261120
        %v273 = vsel %vm271, %v265, 0
        %v276 = vsel %vm271, %v266, 0
        %278 = vmatprep.subr.mxu0 0.0
        %279 = vmatpush1.msra.mxu0 %v267
        %280 = vmatprep.subr.mxu0 0.0
        %281 = vmatpush1.msra.mxu0 %v268
        %282 = vmatprep.subr.mxu0 0.0
        %283 = vmatpush1.msra.mxu0 %v269
        %284 = vmatprep.subr.mxu0 0.0
        %285 = vmatpush1.msra.mxu0 %v270
        %286 = vmatprep.subr.mxu0 0.0
        %287 = vmatpush1.msra.mxu0 0.0
        %288 = vmatprep.subr.mxu0 0.0
        %289 = vmatpush1.msra.mxu0 0.0
        %290 = vmatprep.subr.mxu0 0.0
        %291 = vmatpush1.msra.mxu0 0.0
        %292 = vmatprep.subr.mxu0 0.0
        %293 = vmatpush1.msra.mxu0 0.0
        %294 = vmatprep.subr.mxu0 0.0
        %295 = vmatpush1.msra.mxu0 0.0
        %296 = vmatprep.subr.mxu0 0.0
        %297 = vmatpush1.msra.mxu0 0.0
        %298 = vmatprep.subr.mxu0 0.0
        %299 = vmatpush1.msra.mxu0 0.0
        %300 = vmatprep.subr.mxu0 0.0
        %301 = vmatpush1.msra.mxu0 0.0
        %302 = vmatprep.subr.mxu0 0.0
        %303 = vmatpush1.msra.mxu0 0.0
        %304 = vmatprep.subr.mxu0 0.0
        %305 = vmatpush1.msra.mxu0 0.0
        %306 = vmatprep.subr.mxu0 0.0
        %307 = vmatpush1.msra.mxu0 0.0
        %308 = vmatprep.subr.mxu0 0.0
        %309 = vmatpush1.msra.mxu0 0.0
        %310 = vmatprep.subr.mxu0 0.0
        %311 = vmatpush1.msra.mxu0 0.0
        %312 = vmatprep.subr.mxu0 0.0
        %313 = vmatpush1.msra.mxu0 0.0
        %314 = vmatprep.subr.mxu0 0.0
        %315 = vmatpush1.msra.mxu0 0.0
        %316 = vmatprep.subr.mxu0 0.0
        %317 = vmatpush1.msra.mxu0 0.0
        %318 = vmatprep.subr.mxu0 0.0
        %319 = vmatpush1.msra.mxu0 0.0
        %320 = vmatprep.subr.mxu0 0.0
        %321 = vmatpush1.msra.mxu0 0.0
        %322 = vmatprep.subr.mxu0 0.0
        %323 = vmatpush1.msra.mxu0 0.0
        %324 = vmatprep.subr.mxu0 0.0
        %325 = vmatpush1.msra.mxu0 0.0
        %326 = vmatprep.subr.mxu0 0.0
        %327 = vmatpush1.msra.mxu0 0.0
        %328 = vmatprep.subr.mxu0 0.0
        %329 = vmatpush1.msra.mxu0 0.0
        %330 = vmatprep.subr.mxu0 0.0
        %331 = vmatpush1.msra.mxu0 0.0
        %332 = vmatprep.subr.mxu0 0.0
        %333 = vmatpush1.msra.mxu0 0.0
        %334 = vmatprep.subr.mxu0 0.0
        %335 = vmatpush1.msra.mxu0 0.0
        %336 = vmatprep.subr.mxu0 0.0
        %337 = vmatpush1.msra.mxu0 0.0
        %338 = vmatprep.subr.mxu0 0.0
        %339 = vmatpush1.msra.mxu0 0.0
        %340 = vmatprep.subr.mxu0 0.0
        %341 = vmatpush1.msra.mxu0 0.0
        %342 = vmatprep.mubr.f32.mxu0 0.0
        %343 = vmatmul.mubr.f32.gmra.mrb[0].mxu0 %v273
        %v344 = vpop.f32.mrb[0].mxu0
        %v345 = vadd.f32 0.0, %v344
        %v346 = vpop.f32.mrb[0].mxu0
        %347 = vmatprep.mubr.f32.mxu0 0.0
        %348 = vmatmul.mubr.f32.gmra.mrb[0].mxu0 %v276
        %v349 = vpop.f32.mrb[0].mxu0
        %v350 = vadd.f32 0.0, %v349
        %v351 = vpop.f32.mrb[0].mxu0
        %352 = vdwg.mxu0
        %v353 = vadd.f32 %v263, %v345
        %v354 = vadd.f32 %v264, %v350
        %355 = vst [vmem:[#allocation2] sm:$0xff] %v353
        %356 = vst [vmem:[#allocation2 + $0x8] sm:$0xff] %v354
        // Predicated region
        $region45: #{tpu_custom_call.1} parent=31 // pred_check
          %p357 = pneg %p257
        $region46: #{tpu_custom_call.1} parent=31 // pred_check_branch
          %359 = sbr.rel (%p357) target = $region48
        $region47: #{tpu_custom_call.1} parent=31 // pred_region
          %v360 = vld [vmem:[#allocation2] sm:$0xff]
          %v361 = vld [vmem:[#allocation2 + $0x8] sm:$0xff]
          %v362 = vld [vmem:[%s255] sm:$0x1]
          %v364 = vlaneseq
          %v365 = vshrl.u32 %v364, 7
          %v366 = vsub.s32 0, %v365
          %v367 = vrot.slane %v362, %v366
          %v369 = vadd.f32 %v360, %v367
          %v370 = vadd.f32 %v361, %v367
          %371 = vst [vmem:[%s250] sm:$0xff] %v369
          %372 = vst [vmem:[%s250 + $0x8] sm:$0xff] %v370
        $region48: #{tpu_custom_call.1} parent=31 // pred_fallthru
          _
        %s373 = sand.u32 %s132, 1
        %s374 = scalar_lea.sflag [#allocation5], %s373
        %s375 = sand.u32 %s132, 1
        %s376 = smul.addr %s375, 16
        %s377 = scalar_lea.vmem [#allocation8], %s376
        // Predicated region
        $region49: #{tpu_custom_call.1} parent=31 // pred_check
          %p378 = pneg %p142
        $region50: #{tpu_custom_call.1} parent=31 // pred_check_branch
          %380 = sbr.rel (%p378) target = $region52
        $region51: #{tpu_custom_call.1} parent=31 // pred_region
          %s381 = smul.u32 2, %s26
          %s383 = ssub.s32 256, 256
          %384 = vsyncadd %s374, %s383
          %s385 = smul.addr %s381, 3
          %s386 = sadd.s32 %s27, %s385
          %s387 = smul.addr %s386, 128
          %s388 = scalar_lea.hbm %s3, %s387
          %s389 = sshll.u32 %s377, 4
          %s390 = int_to_ptr.vmem [resolvable:$true] %s389
          %395 = dma.vmem_to_hbm [thread:$0]  %s390, 256, %s388, %s374, 128, 384, 8
        $region52: #{tpu_custom_call.1} parent=31 // pred_fallthru
          _
      $region32: #{tpu_custom_call.1} parent=5 // pred_fallthru
        _
      %p396 = scmp.le.s32.totalorder 2, %s16
      // Predicated region
      $region53: #{tpu_custom_call.1} parent=5 // pred_check
        %p397 = pneg %p396
      $region54: #{tpu_custom_call.1} parent=5 // pred_check_branch
        %399 = sbr.rel (%p397) target = $region56
      $region55: #{tpu_custom_call.1} parent=5 // pred_region
        %s400 = ssub.s32 %s16, 2
        // Predicated region
        $region57: #{tpu_custom_call.1} parent=55 // pred_check
          %p401 = pneg %p148
        $region58: #{tpu_custom_call.1} parent=55 // pred_check_branch
          %403 = sbr.rel (%p401) target = $region60
        $region59: #{tpu_custom_call.1} parent=55 // pred_region
          %s404 = sand.u32 %s133, 1
          %s405 = scalar_lea.sflag [#allocation5], %s404
          %s406 = sand.u32 %s133, 1
          %s407 = smul.addr %s406, 16
          %s408 = scalar_lea.vmem [#allocation8], %s407
          %409 = dma.done %s405, 256
        $region60: #{tpu_custom_call.1} parent=55 // pred_fallthru
          _
      $region56: #{tpu_custom_call.1} parent=5 // pred_fallthru
        _
    $region6: #{tpu_custom_call.1} parent=1 // loop_footer
      %s20 = sadd.s32 1, %s16
    $region7: #{tpu_custom_call.1} parent=1 // loop_footer_branch
      %15 = sbr.rel target = $region3
    $region8: #{tpu_custom_call.1} parent=1 // loop_exit
      _
    %410 = vsyncpa [#allocation4], 1
    %s411 = scalar_lea.sflag [#allocation4], 1
    %412 = vsyncpa %s411, 1
    %413 = vsyncpa [#allocation7], 1
    %s414 = scalar_lea.sflag [#allocation7], 1
    %415 = vsyncpa %s414, 1
    %416 = vsyncpa [#allocation5], 1
    %s417 = scalar_lea.sflag [#allocation5], 1
    %418 = vsyncpa %s417, 1

</llo_original>
